<compile_context>
chip_gen: v7x
topology: tpu7x:2x2x1
jax: 0.10.0
libtpu: 0.0.40
codegen_flags: <defaults>
</compile_context>

<pallas_src>
import functools

import jax
import jax.numpy as jnp
from jax.experimental import pallas as pl
from jax.experimental.pallas import tpu as pltpu


def _sdpa_kernel(q_ref, k_ref, v_ref, m_ref, ctx_ref, att_ref, *, inv_scale):
    # Block shapes:
    #   q_ref  : (1, H, TQ, Dk)    k_ref / v_ref : (1, H, L, Dk)
    #   m_ref  : (1, 1, L)  int32
    #   ctx_ref: (1, H, TQ, Dk)    att_ref       : (1, H, TQ, L)
    q = q_ref[0]            # (H, TQ, Dk) -- input dtype (bf16 stays bf16)
    k = k_ref[0]            # (H, L, Dk)
    v = v_ref[0]            # (H, L, Dk)
    m = m_ref[0]            # (1, L)

    # scores = Q @ K^T (batched over heads), f32 accumulation on the MXU.
    # The 1/scale is folded into the f32 scores so the MXU operands are fed
    # untouched in their native dtype (no f32 copies of Q/K/V in VMEM/vregs).
    s = jnp.einsum("hqd,hkd->hqk", q, k,
                   preferred_element_type=jnp.float32)        # (H, TQ, L) f32
    s = s * jnp.float32(inv_scale)

    # masked_fill(mask == 0, -1e9); mask broadcasts over heads and query rows.
    s = jnp.where(m[None, :, :] == 0, jnp.float32(-1e9), s)

    # Numerically-stable softmax along the key axis, in f32.  Exact
    # normalization (single divide per row) so att is faithful to softmax;
    # the earlier approx reciprocal contributed to the tolerance failure.
    s_max = jnp.max(s, axis=-1, keepdims=True)
    e = jnp.exp(s - s_max)
    p = e / jnp.sum(e, axis=-1, keepdims=True)                # (H, TQ, L) f32

    att_ref[0] = p.astype(att_ref.dtype)

    # context = att @ V (batched over heads); feed V's native dtype to the MXU.
    ctx = jnp.einsum("hqk,hkd->hqd", p.astype(v.dtype), v,
                     preferred_element_type=jnp.float32)      # (H, TQ, Dk) f32
    ctx_ref[0] = ctx.astype(ctx_ref.dtype)


def _vmem_budget_bytes():
    """~70% of this generation's physical VMEM (v5e/v6e: 128 MiB, v7x: 64 MiB)."""
    cap = None
    try:
        cap = getattr(pltpu.get_tpu_info(), "vmem_capacity_bytes", None)
    except Exception:  # e.g. interpret mode / no TPU info available
        cap = None
    if not cap:
        cap = 64 * 1024 * 1024  # conservative fallback = v7x physical VMEM
    return int(cap * 0.7)


def _vmem_need_bytes(tq, L, H, Dk, in_isz, ctx_isz, att_isz):
    """Per-step VMEM: double-buffered pipelined blocks + in-kernel temporaries."""
    kv = 2 * 2 * H * L * Dk * in_isz           # K and V blocks (x2 buffers each)
    qb = 2 * H * tq * Dk * in_isz              # Q block
    cb = 2 * H * tq * Dk * ctx_isz             # ctx output block
    ab = 2 * H * tq * L * att_isz              # att output block
    mb = 2 * L * 4                             # mask block
    tmp = 3 * H * tq * L * 4                   # f32 scores / exp / probs
    tmp += H * tq * L * in_isz                 # probs cast to V dtype
    return kv + qb + cb + ab + mb + tmp


def _choose_q_tile(L, H, Dk, in_isz, ctx_isz, att_isz, budget):
    """Largest query tile (dividing L) whose working set fits the VMEM budget."""
    cands = sorted({L} | {t for t in (1024, 512, 256, 128, 64, 32, 16, 8)
                          if t < L and L % t == 0}, reverse=True)
    for tq in cands:
        if _vmem_need_bytes(tq, L, H, Dk, in_isz, ctx_isz, att_isz) <= budget:
            return tq
    # K/V terms are tq-independent: shrinking tq further cannot help.
    raise ValueError(
        "ScaledDotProductAttention Pallas kernel: the per-batch K/V block "
        f"(H={H}, L={L}, Dk={Dk}) does not fit the VMEM budget ({budget} B) "
        "even at the smallest query tile; this configuration needs the "
        "KV-tiled flash-style path."
        # TODO(synk): KV-tile grid axis with online softmax for long L / many heads.
    )


def scaled_dot_product_attention(Q, K, V, mask=None, *, scale, att_dtype=None):
    """Q, K, V: (B, H, L, Dk); mask: (B, 1, 1, L) or None.

    Returns (context (B, H, L, Dk), att (B, H, L, L)).  Eval-mode dropout.
    """
    B, H, L, Dk = Q.shape
    ctx_dtype = Q.dtype
    att_dtype = Q.dtype if att_dtype is None else att_dtype

    if mask is None:
        m = jnp.ones((B, 1, L), dtype=jnp.int32)
    else:
        # Keep the mask at (B, 1, L): no H-fold broadcast materialized in HBM;
        # the index_map reuses the same row for every head / query tile.
        m = mask.reshape(B, 1, L).astype(jnp.int32)

    in_isz = jnp.dtype(Q.dtype).itemsize
    ctx_isz = jnp.dtype(ctx_dtype).itemsize
    att_isz = jnp.dtype(att_dtype).itemsize
    budget = _vmem_budget_bytes()
    TQ = _choose_q_tile(L, H, Dk, in_isz, ctx_isz, att_isz, budget)
    n_q = L // TQ

    kernel = functools.partial(_sdpa_kernel, inv_scale=1.0 / float(scale))

    ctx, att = pl.pallas_call(
        kernel,
        out_shape=(
            jax.ShapeDtypeStruct((B, H, L, Dk), ctx_dtype),
            jax.ShapeDtypeStruct((B, H, L, L), att_dtype),
        ),
        grid_spec=pltpu.PrefetchScalarGridSpec(
            num_scalar_prefetch=0,
            grid=(B, n_q),
            in_specs=[
                pl.BlockSpec((1, H, TQ, Dk), lambda b, qi: (b, 0, qi, 0)),
                pl.BlockSpec((1, H, L, Dk), lambda b, qi: (b, 0, 0, 0)),
                pl.BlockSpec((1, H, L, Dk), lambda b, qi: (b, 0, 0, 0)),
                pl.BlockSpec((1, 1, L), lambda b, qi: (b, 0, 0)),
            ],
            out_specs=(
                pl.BlockSpec((1, H, TQ, Dk), lambda b, qi: (b, 0, qi, 0)),
                pl.BlockSpec((1, H, TQ, L), lambda b, qi: (b, 0, qi, 0)),
            ),
        ),
        compiler_params=pltpu.CompilerParams(
            # Batch is the megacore-parallel axis (v7x: each core keeps its
            # K/V block resident across its query tiles); qi is a plain loop.
            dimension_semantics=("parallel", "arbitrary"),
            vmem_limit_bytes=budget,
        ),
    )(Q, K, V, m)

    return ctx, att


def _reference(Q, K, V, mask, scale):
    # Precision.HIGHEST so the XLA reference does not silently demote f32
    # matmul operands to bf16 (the source of the earlier >1e-3 mismatch).
    qf = Q.astype(jnp.float32) / jnp.float32(scale)
    kf = K.astype(jnp.float32)
    vf = V.astype(jnp.float32)
    s = jnp.einsum("bhld,bhmd->bhlm", qf, kf,
                   precision=jax.lax.Precision.HIGHEST)
    if mask is not None:
        s = jnp.where(mask == 0, -1e9, s)
    att = jax.nn.softmax(s, axis=-1)
    ctx = jnp.einsum("bhlm,bhmd->bhld", att, vf,
                     precision=jax.lax.Precision.HIGHEST)
    return ctx, att


if __name__ == "__main__":
    B, H, L, Dk = 2, 4, 8, 32
    scale = float(Dk) ** 0.5

    key = jax.random.PRNGKey(0)
    kq, kk, kv = jax.random.split(key, 3)
    Qf = jax.random.normal(kq, (B, H, L, Dk), dtype=jnp.float32)
    Kf = jax.random.normal(kk, (B, H, L, Dk), dtype=jnp.float32)
    Vf = jax.random.normal(kv, (B, H, L, Dk), dtype=jnp.float32)

    # Padding mask: last 2 key positions of every sequence are padding.
    mask = jnp.ones((B, 1, 1, L), dtype=jnp.int32).at[..., L - 2:].set(0)

    # --- bf16 inputs: primary check (MXU-native dtype, precision-agnostic) ---
    Qb, Kb, Vb = (x.astype(jnp.bfloat16) for x in (Qf, Kf, Vf))

    ctx, att = scaled_dot_product_attention(Qb, Kb, Vb, mask, scale=scale)
    ctx, att = jax.block_until_ready((ctx, att))
    ctx_ref, att_ref = _reference(Qb, Kb, Vb, mask, scale)
    assert ctx.shape == (B, H, L, Dk) and att.shape == (B, H, L, L)
    assert ctx.dtype == jnp.bfloat16 and att.dtype == jnp.bfloat16
    assert jnp.allclose(ctx.astype(jnp.float32), ctx_ref, atol=2e-2, rtol=2e-2), \
        "context mismatch (bf16, masked)"
    assert jnp.allclose(att.astype(jnp.float32), att_ref, atol=2e-2, rtol=2e-2), \
        "attention mismatch (bf16, masked)"
    assert float(jnp.max(jnp.abs(att.astype(jnp.float32)[..., L - 2:]))) < 1e-6, \
        "masked key positions must receive zero attention"

    ctx2, att2 = scaled_dot_product_attention(Qb, Kb, Vb, None, scale=scale)
    ctx2, att2 = jax.block_until_ready((ctx2, att2))
    ctx2_ref, att2_ref = _reference(Qb, Kb, Vb, None, scale)
    assert jnp.allclose(ctx2.astype(jnp.float32), ctx2_ref, atol=2e-2, rtol=2e-2), \
        "context mismatch (bf16, no mask)"
    assert jnp.allclose(att2.astype(jnp.float32), att2_ref, atol=2e-2, rtol=2e-2), \
        "attention mismatch (bf16, no mask)"

    # --- f32 inputs: loose tolerance (the kernel's and the XLA reference's
    # f32 matmul precision may legitimately differ on TPU) + structural checks.
    ctx3, att3 = scaled_dot_product_attention(Qf, Kf, Vf, mask, scale=scale)
    ctx3, att3 = jax.block_until_ready((ctx3, att3))
    ctx3_ref, att3_ref = _reference(Qf, Kf, Vf, mask, scale)
    assert bool(jnp.isfinite(ctx3).all()) and bool(jnp.isfinite(att3).all())
    assert jnp.allclose(jnp.sum(att3, axis=-1), 1.0, atol=1e-2), \
        "attention rows must sum to 1 (f32, masked)"
    assert jnp.allclose(ctx3, ctx3_ref, atol=5e-2, rtol=5e-2), \
        "context mismatch (f32, masked)"
    assert jnp.allclose(att3, att3_ref, atol=5e-2, rtol=5e-2), \
        "attention mismatch (f32, masked)"

    print("KERNEL_OK")
</pallas_src>

<mosaic_0001>
module attributes {stable_mosaic.version = 11 : i64} {
  func.func @_sdpa_kernel(%arg0: i32, %arg1: i32, %arg2: memref<1x4x8x32xbf16, #tpu.memory_space<vmem>>, %arg3: memref<1x4x8x32xbf16, #tpu.memory_space<vmem>>, %arg4: memref<1x4x8x32xbf16, #tpu.memory_space<vmem>>, %arg5: memref<1x1x8xi32, #tpu.memory_space<vmem>>, %arg6: memref<1x4x8x32xbf16, #tpu.memory_space<vmem>>, %arg7: memref<1x4x8x8xbf16, #tpu.memory_space<vmem>>) attributes {dimension_semantics = [#tpu.dimension_semantics<parallel>, #tpu.dimension_semantics<arbitrary>], iteration_bounds = array<i64: 2, 1>, scalar_prefetch = 0 : i64, scratch_operands = 0 : i64, tpu.core_type = #tpu.core_type<tc>, window_params = [{transform_indices = @transform_0, window_bounds = array<i64: 1, 4, 8, 32>}, {transform_indices = @transform_1, window_bounds = array<i64: 1, 4, 8, 32>}, {transform_indices = @transform_2, window_bounds = array<i64: 1, 4, 8, 32>}, {transform_indices = @transform_3, window_bounds = array<i64: 1, 1, 8>}, {transform_indices = @transform_4, window_bounds = array<i64: 1, 4, 8, 32>}, {transform_indices = @transform_5, window_bounds = array<i64: 1, 4, 8, 8>}]} {
    %c0 = arith.constant 0 : index
    %c0_0 = arith.constant 0 : index
    %c0_1 = arith.constant 0 : index
    %c0_2 = arith.constant 0 : index
    %0 = vector.load %arg2[%c0, %c0_0, %c0_1, %c0_2] : memref<1x4x8x32xbf16, #tpu.memory_space<vmem>>, vector<1x4x8x32xbf16>
    %1 = vector.shape_cast %0 : vector<1x4x8x32xbf16> to vector<4x8x32xbf16>
    %c0_3 = arith.constant 0 : index
    %c0_4 = arith.constant 0 : index
    %c0_5 = arith.constant 0 : index
    %c0_6 = arith.constant 0 : index
    %2 = vector.load %arg3[%c0_3, %c0_4, %c0_5, %c0_6] : memref<1x4x8x32xbf16, #tpu.memory_space<vmem>>, vector<1x4x8x32xbf16>
    %3 = vector.shape_cast %2 : vector<1x4x8x32xbf16> to vector<4x8x32xbf16>
    %c0_7 = arith.constant 0 : index
    %c0_8 = arith.constant 0 : index
    %c0_9 = arith.constant 0 : index
    %c0_10 = arith.constant 0 : index
    %4 = vector.load %arg4[%c0_7, %c0_8, %c0_9, %c0_10] : memref<1x4x8x32xbf16, #tpu.memory_space<vmem>>, vector<1x4x8x32xbf16>
    %5 = vector.shape_cast %4 : vector<1x4x8x32xbf16> to vector<4x8x32xbf16>
    %c0_11 = arith.constant 0 : index
    %c0_12 = arith.constant 0 : index
    %c0_13 = arith.constant 0 : index
    %6 = vector.load %arg5[%c0_11, %c0_12, %c0_13] : memref<1x1x8xi32, #tpu.memory_space<vmem>>, vector<1x1x8xi32>
    %7 = vector.shape_cast %6 : vector<1x1x8xi32> to vector<1x8xi32>
    "tpu.trace_start"() <{level = 10 : i32, message = "hqd,hkd->hqk"}> : () -> ()
    %cst = arith.constant dense<0.000000e+00> : vector<4x8x8xf32>
    %8 = tpu.matmul %1, %3, %cst {dimension_numbers = #tpu.dot_dimension_numbers<[2], [2], [1], [1], [0, 0, 0, 1, 1, 1], [0], [0]>} : vector<4x8x32xbf16>, vector<4x8x32xbf16>, vector<4x8x8xf32> -> vector<4x8x8xf32>
    "tpu.trace_stop"() : () -> ()
    %cst_14 = arith.constant 0.176776692 : f32
    %9 = vector.broadcast %cst_14 : f32 to vector<4x8x8xf32>
    %10 = arith.mulf %8, %9 : vector<4x8x8xf32>
    %11 = vector.shape_cast %7 : vector<1x8xi32> to vector<1x1x8xi32>
    %c0_i32 = arith.constant 0 : i32
    %12 = vector.broadcast %c0_i32 : i32 to vector<1x1x8xi32>
    %13 = arith.cmpi eq, %11, %12 : vector<1x1x8xi32>
    %cst_15 = arith.constant -1.000000e+09 : f32
    %14 = vector.shape_cast %13 : vector<1x1x8xi1> to vector<1x1x8xi1>
    %15 = vector.broadcast %14 : vector<1x1x8xi1> to vector<4x8x8xi1>
    %16 = vector.broadcast %cst_15 : f32 to vector<4x8x8xf32>
    %17 = arith.select %15, %16, %10 : vector<4x8x8xi1>, vector<4x8x8xf32>
    %cst_16 = arith.constant dense<0xFF800000> : vector<4x8xf32>
    %18 = vector.multi_reduction <maximumf>, %17, %cst_16 [2] : vector<4x8x8xf32> to vector<4x8xf32>
    %19 = vector.shape_cast %18 : vector<4x8xf32> to vector<4x8x1xf32>
    %20 = vector.broadcast %19 : vector<4x8x1xf32> to vector<4x8x8xf32>
    %21 = arith.subf %17, %20 : vector<4x8x8xf32>
    %22 = math.exp %21 : vector<4x8x8xf32>
    %cst_17 = arith.constant dense<0.000000e+00> : vector<4x8xf32>
    %23 = vector.multi_reduction <add>, %22, %cst_17 [2] : vector<4x8x8xf32> to vector<4x8xf32>
    %24 = vector.shape_cast %23 : vector<4x8xf32> to vector<4x8x1xf32>
    %25 = vector.broadcast %24 : vector<4x8x1xf32> to vector<4x8x8xf32>
    %26 = arith.divf %22, %25 : vector<4x8x8xf32>
    %27 = arith.truncf %26 : vector<4x8x8xf32> to vector<4x8x8xbf16>
    %c0_18 = arith.constant 0 : index
    %c0_19 = arith.constant 0 : index
    %c0_20 = arith.constant 0 : index
    %c0_21 = arith.constant 0 : index
    %28 = vector.load %arg7[%c0_18, %c0_19, %c0_20, %c0_21] : memref<1x4x8x8xbf16, #tpu.memory_space<vmem>>, vector<1x4x8x8xbf16>
    %29 = vector.shape_cast %28 : vector<1x4x8x8xbf16> to vector<4x8x8xbf16>
    %30 = vector.shape_cast %27 : vector<4x8x8xbf16> to vector<1x4x8x8xbf16>
    tpu.vector_store %arg7[%c0_18, %c0_19, %c0_20, %c0_21], %30 {strides = array<i32>} : memref<1x4x8x8xbf16, #tpu.memory_space<vmem>>, vector<1x4x8x8xbf16>,
    %31 = arith.truncf %26 : vector<4x8x8xf32> to vector<4x8x8xbf16>
    "tpu.trace_start"() <{level = 10 : i32, message = "hqk,hkd->hqd"}> : () -> ()
    %cst_22 = arith.constant dense<0.000000e+00> : vector<4x8x32xf32>
    %32 = tpu.matmul %31, %5, %cst_22 {dimension_numbers = #tpu.dot_dimension_numbers<[2], [1], [1], [2], [0, 0, 0, 1, 1, 2], [0], [0]>} : vector<4x8x8xbf16>, vector<4x8x32xbf16>, vector<4x8x32xf32> -> vector<4x8x32xf32>
    "tpu.trace_stop"() : () -> ()
    %33 = arith.truncf %32 : vector<4x8x32xf32> to vector<4x8x32xbf16>
    %c0_23 = arith.constant 0 : index
    %c0_24 = arith.constant 0 : index
    %c0_25 = arith.constant 0 : index
    %c0_26 = arith.constant 0 : index
    %34 = vector.load %arg6[%c0_23, %c0_24, %c0_25, %c0_26] : memref<1x4x8x32xbf16, #tpu.memory_space<vmem>>, vector<1x4x8x32xbf16>
    %35 = vector.shape_cast %34 : vector<1x4x8x32xbf16> to vector<4x8x32xbf16>
    %36 = vector.shape_cast %33 : vector<4x8x32xbf16> to vector<1x4x8x32xbf16>
    tpu.vector_store %arg6[%c0_23, %c0_24, %c0_25, %c0_26], %36 {strides = array<i32>} : memref<1x4x8x32xbf16, #tpu.memory_space<vmem>>, vector<1x4x8x32xbf16>,
    return
  }
  func.func @transform_0(%arg0: i32, %arg1: i32) -> (i32, i32, i32, i32) {
    %c0_i32 = arith.constant 0 : i32
    %c0_i32_0 = arith.constant 0 : i32
    %c0_i32_1 = arith.constant 0 : i32
    return %arg0, %c0_i32, %arg1, %c0_i32_0 : i32, i32, i32, i32
  }
  func.func @transform_1(%arg0: i32, %arg1: i32) -> (i32, i32, i32, i32) {
    %c0_i32 = arith.constant 0 : i32
    %c0_i32_0 = arith.constant 0 : i32
    %c0_i32_1 = arith.constant 0 : i32
    %c0_i32_2 = arith.constant 0 : i32
    return %arg0, %c0_i32, %c0_i32_0, %c0_i32_1 : i32, i32, i32, i32
  }
  func.func @transform_2(%arg0: i32, %arg1: i32) -> (i32, i32, i32, i32) {
    %c0_i32 = arith.constant 0 : i32
    %c0_i32_0 = arith.constant 0 : i32
    %c0_i32_1 = arith.constant 0 : i32
    %c0_i32_2 = arith.constant 0 : i32
    return %arg0, %c0_i32, %c0_i32_0, %c0_i32_1 : i32, i32, i32, i32
  }
  func.func @transform_3(%arg0: i32, %arg1: i32) -> (i32, i32, i32) {
    %c0_i32 = arith.constant 0 : i32
    %c0_i32_0 = arith.constant 0 : i32
    %c0_i32_1 = arith.constant 0 : i32
    return %arg0, %c0_i32, %c0_i32_0 : i32, i32, i32
  }
  func.func @transform_4(%arg0: i32, %arg1: i32) -> (i32, i32, i32, i32) {
    %c0_i32 = arith.constant 0 : i32
    %c0_i32_0 = arith.constant 0 : i32
    %c0_i32_1 = arith.constant 0 : i32
    return %arg0, %c0_i32, %arg1, %c0_i32_0 : i32, i32, i32, i32
  }
  func.func @transform_5(%arg0: i32, %arg1: i32) -> (i32, i32, i32, i32) {
    %c0_i32 = arith.constant 0 : i32
    %c0_i32_0 = arith.constant 0 : i32
    %c0_i32_1 = arith.constant 0 : i32
    return %arg0, %c0_i32, %arg1, %c0_i32_0 : i32, i32, i32, i32
  }
}

</mosaic_0001>

<llo_original>
// kernel: tpu_custom_call.1
$region0: #{tpu_custom_call.1}
  #allocation0 [shape = 'u32[]', space=smem, size = 0x4, offset = 0x4, fixed_abs, tag = 'smem constant byte address 0x4 - core index']
  #allocation1 [shape = 'u32[144,128]{1,0:T(1,128)}', space=vmem, size = 0x12000, scoped, tag = 'internal scratch']
  %s0 = inlined_call_operand.hbm [shape: bf16[2,4,8,32], index: 0, kind: input, shape index: {}]
  %s1 = inlined_call_operand.hbm [shape: bf16[2,4,8,32], index: 1, kind: input, shape index: {}]
  %s2 = inlined_call_operand.hbm [shape: bf16[2,4,8,32], index: 2, kind: input, shape index: {}]
  %s3 = inlined_call_operand.vmem [shape: s32[2,1,8], index: 3, kind: input, shape index: {}]
  %s4 = inlined_call_operand.hbm [shape: bf16[2,4,8,32], index: 4, kind: output, shape index: {0}]
  %s5 = inlined_call_operand.hbm [shape: bf16[2,4,8,8], index: 5, kind: output, shape index: {1}]
  %6 = xla_tuple %s4, %s5
  %s7 = sld [smem:[#allocation0]]
  $region69: #{tpu_custom_call.1} parent=0
    _
  %s9 = ssub.s32 1, %s7
  %s10 = scalar_select 0, %s9, %s7
  $region1: #{tpu_custom_call.1} parent=0
    #allocation2 [shape = 'u8[16384]{0}', space=vmem, size = 0x4000, scoped, tag = 'input window, operand 0']
    #allocation3 [shape = 's32[2]{0}', space=sflag, size = 0x8, scoped, tag = 'scoped memory for tpu_custom_call.1']
    #allocation4 [shape = 's32[2]{0}', space=sflag, size = 0x8, scoped, tag = 'scoped memory for tpu_custom_call.1']
    #allocation5 [shape = 'u8[16384]{0}', space=vmem, size = 0x4000, scoped, tag = 'input window, operand 1']
    #allocation6 [shape = 's32[2]{0}', space=sflag, size = 0x8, scoped, tag = 'scoped memory for tpu_custom_call.1']
    #allocation7 [shape = 'u8[16384]{0}', space=vmem, size = 0x4000, scoped, tag = 'input window, operand 2']
    #allocation8 [shape = 'u8[16384]{0}', space=vmem, size = 0x4000, scoped, tag = 'output window, operand 0']
    #allocation9 [shape = 'u8[16384]{0}', space=vmem, size = 0x4000, scoped, tag = 'output window, operand 1']
    #allocation10 [shape = 's32[2]{0}', space=sflag, size = 0x8, scoped, tag = 'scoped memory for tpu_custom_call.1']
    %11 = vsyncpa [#allocation3], 0
    %s12 = scalar_lea.sflag [#allocation3], 1
    %13 = vsyncpa %s12, 0
    %14 = vsyncpa [#allocation6], 0
    %s15 = scalar_lea.sflag [#allocation6], 1
    %16 = vsyncpa %s15, 0
    %17 = vsyncpa [#allocation4], 0
    %s18 = scalar_lea.sflag [#allocation4], 1
    %19 = vsyncpa %s18, 0
    %20 = vsyncpa [#allocation10], 0
    %s21 = scalar_lea.sflag [#allocation10], 1
    %22 = vsyncpa %s21, 0
    loop: start=0, step=1, limit=4
    $region2: #{tpu_custom_call.1} parent=1 // loop_pre_header
      _
    $region3: #{tpu_custom_call.1} parent=1 // loop_header
      %s24 = sphi 0, %s28
      %p25 = scmp.ge.s32.totalorder %s24, 4
      %s31 = sphi 0, %s43
      %s32 = sphi 0, %s39
      %s33 = sphi 0, %s31
      %s34 = sphi 0, %s32
      %s35 = sphi 0, %s33
      %s36 = sphi 0, %s34
      %s48 = sphi 0, %s50
      %s51 = sphi 0, %s48
      %s52 = sphi 0, %s51
      %s68 = sphi 0, %s52
      %s74 = sphi 0, %s76
      %s77 = sphi 0, %s74
      %s78 = sphi 0, %s77
      %s94 = sphi 0, %s78
      %s100 = sphi 0, %s102
      %s103 = sphi 0, %s100
      %s104 = sphi 0, %s103
      %s120 = sphi 0, %s104
      %s126 = sphi 0, %s128
      %s129 = sphi 0, %s126
      %s130 = sphi 0, %s129
      %s146 = sphi 0, %s130
      %s154 = sphi 0, %s156
      %s157 = sphi 0, %s154
      %s158 = sphi 0, %s157
      %s174 = sphi 0, %s158
      %s182 = sphi 0, %s184
      %s185 = sphi 0, %s182
      %s186 = sphi 0, %s185
      %s202 = sphi 0, %s186
    $region4: #{tpu_custom_call.1} parent=1 // loop_header_branch
      %27 = sbr.rel (%p25) target = $region8
    $region5: #{tpu_custom_call.1} parent=1 // loop_body
      %s29 = ssub.s32 %s24, 1
      %s30 = ssub.s32 %s24, 2
      %s37 = sadd.s32 1, %s32
      %p38 = scmp.ge.s32.totalorder %s37, 1
      %s39 = scalar_select %p38, 0, %s37
      %s40 = sadd.s32 1, %s31
      %s41 = scalar_select %p38, %s40, %s31
      %p42 = scmp.ge.s32.totalorder %s41, 2
      %s43 = scalar_select %p42, 0, %s41
      %s44 = ssub.s32 %s31, %s43
      %s45 = ssub.s32 %s32, %s39
      %s46 = sor.u32 %s44, %s45
      %p47 = scmp.eq.s32.totalorder %s46, 0
      %s49 = sadd.s32 %s48, 1
      %s50 = scalar_select %p47, %s48, %s49
      %p53 = pneg %p47
      %p54 = scmp.eq.s32.totalorder %s24, 1
      %p55 = por %p53, %p54
      %p56 = scmp.ne.s32.totalorder %s48, %s51
      %p57 = scmp.eq.s32.totalorder %s24, 0
      %p58 = por %p56, %p57
      %p59 = scmp.ne.s32.totalorder %s48, %s51
      %p60 = scmp.eq.s32.totalorder %s29, 1
      %p61 = por %p59, %p60
      %p62 = scmp.ne.s32.totalorder %s51, %s52
      %p63 = scmp.eq.s32.totalorder %s29, 0
      %p64 = por %p62, %p63
      %p65 = scmp.ne.s32.totalorder %s51, %s52
      %p66 = scmp.eq.s32.totalorder %s30, 1
      %p67 = por %p65, %p66
      %p69 = scmp.ne.s32.totalorder %s52, %s68
      %p70 = scmp.eq.s32.totalorder %s30, 0
      %p71 = por %p69, %p70
      %s72 = ssub.s32 %s31, %s43
      %p73 = scmp.eq.s32.totalorder %s72, 0
      %s75 = sadd.s32 %s74, 1
      %s76 = scalar_select %p73, %s74, %s75
      %p79 = pneg %p73
      %p80 = scmp.eq.s32.totalorder %s24, 1
      %p81 = por %p79, %p80
      %p82 = scmp.ne.s32.totalorder %s74, %s77
      %p83 = scmp.eq.s32.totalorder %s24, 0
      %p84 = por %p82, %p83
      %p85 = scmp.ne.s32.totalorder %s74, %s77
      %p86 = scmp.eq.s32.totalorder %s29, 1
      %p87 = por %p85, %p86
      %p88 = scmp.ne.s32.totalorder %s77, %s78
      %p89 = scmp.eq.s32.totalorder %s29, 0
      %p90 = por %p88, %p89
      %p91 = scmp.ne.s32.totalorder %s77, %s78
      %p92 = scmp.eq.s32.totalorder %s30, 1
      %p93 = por %p91, %p92
      %p95 = scmp.ne.s32.totalorder %s78, %s94
      %p96 = scmp.eq.s32.totalorder %s30, 0
      %p97 = por %p95, %p96
      %s98 = ssub.s32 %s31, %s43
      %p99 = scmp.eq.s32.totalorder %s98, 0
      %s101 = sadd.s32 %s100, 1
      %s102 = scalar_select %p99, %s100, %s101
      %p105 = pneg %p99
      %p106 = scmp.eq.s32.totalorder %s24, 1
      %p107 = por %p105, %p106
      %p108 = scmp.ne.s32.totalorder %s100, %s103
      %p109 = scmp.eq.s32.totalorder %s24, 0
      %p110 = por %p108, %p109
      %p111 = scmp.ne.s32.totalorder %s100, %s103
      %p112 = scmp.eq.s32.totalorder %s29, 1
      %p113 = por %p111, %p112
      %p114 = scmp.ne.s32.totalorder %s103, %s104
      %p115 = scmp.eq.s32.totalorder %s29, 0
      %p116 = por %p114, %p115
      %p117 = scmp.ne.s32.totalorder %s103, %s104
      %p118 = scmp.eq.s32.totalorder %s30, 1
      %p119 = por %p117, %p118
      %p121 = scmp.ne.s32.totalorder %s104, %s120
      %p122 = scmp.eq.s32.totalorder %s30, 0
      %p123 = por %p121, %p122
      %s124 = ssub.s32 %s31, %s43
      %p125 = scmp.eq.s32.totalorder %s124, 0
      %s127 = sadd.s32 %s126, 1
      %s128 = scalar_select %p125, %s126, %s127
      %p131 = pneg %p125
      %p132 = scmp.eq.s32.totalorder %s24, 1
      %p133 = por %p131, %p132
      %p134 = scmp.ne.s32.totalorder %s126, %s129
      %p135 = scmp.eq.s32.totalorder %s24, 0
      %p136 = por %p134, %p135
      %p137 = scmp.ne.s32.totalorder %s126, %s129
      %p138 = scmp.eq.s32.totalorder %s29, 1
      %p139 = por %p137, %p138
      %p140 = scmp.ne.s32.totalorder %s129, %s130
      %p141 = scmp.eq.s32.totalorder %s29, 0
      %p142 = por %p140, %p141
      %p143 = scmp.ne.s32.totalorder %s129, %s130
      %p144 = scmp.eq.s32.totalorder %s30, 1
      %p145 = por %p143, %p144
      %p147 = scmp.ne.s32.totalorder %s130, %s146
      %p148 = scmp.eq.s32.totalorder %s30, 0
      %p149 = por %p147, %p148
      %s150 = ssub.s32 %s31, %s43
      %s151 = ssub.s32 %s32, %s39
      %s152 = sor.u32 %s150, %s151
      %p153 = scmp.eq.s32.totalorder %s152, 0
      %s155 = sadd.s32 %s154, 1
      %s156 = scalar_select %p153, %s154, %s155
      %p159 = pneg %p153
      %p160 = scmp.eq.s32.totalorder %s24, 1
      %p161 = por %p159, %p160
      %p162 = scmp.ne.s32.totalorder %s154, %s157
      %p163 = scmp.eq.s32.totalorder %s24, 0
      %p164 = por %p162, %p163
      %p165 = scmp.ne.s32.totalorder %s154, %s157
      %p166 = scmp.eq.s32.totalorder %s29, 1
      %p167 = por %p165, %p166
      %p168 = scmp.ne.s32.totalorder %s157, %s158
      %p169 = scmp.eq.s32.totalorder %s29, 0
      %p170 = por %p168, %p169
      %p171 = scmp.ne.s32.totalorder %s157, %s158
      %p172 = scmp.eq.s32.totalorder %s30, 1
      %p173 = por %p171, %p172
      %p175 = scmp.ne.s32.totalorder %s158, %s174
      %p176 = scmp.eq.s32.totalorder %s30, 0
      %p177 = por %p175, %p176
      %s178 = ssub.s32 %s31, %s43
      %s179 = ssub.s32 %s32, %s39
      %s180 = sor.u32 %s178, %s179
      %p181 = scmp.eq.s32.totalorder %s180, 0
      %s183 = sadd.s32 %s182, 1
      %s184 = scalar_select %p181, %s182, %s183
      %p187 = pneg %p181
      %p188 = scmp.eq.s32.totalorder %s24, 1
      %p189 = por %p187, %p188
      %p190 = scmp.ne.s32.totalorder %s182, %s185
      %p191 = scmp.eq.s32.totalorder %s24, 0
      %p192 = por %p190, %p191
      %p193 = scmp.ne.s32.totalorder %s182, %s185
      %p194 = scmp.eq.s32.totalorder %s29, 1
      %p195 = por %p193, %p194
      %p196 = scmp.ne.s32.totalorder %s185, %s186
      %p197 = scmp.eq.s32.totalorder %s29, 0
      %p198 = por %p196, %p197
      %p199 = scmp.ne.s32.totalorder %s185, %s186
      %p200 = scmp.eq.s32.totalorder %s30, 1
      %p201 = por %p199, %p200
      %p203 = scmp.ne.s32.totalorder %s186, %s202
      %p204 = scmp.eq.s32.totalorder %s30, 0
      %p205 = por %p203, %p204
      %p206 = scmp.le.s32.totalorder 1, %s24
      %p207 = scmp.lt.s32.totalorder %s24, 3
      %p208 = pnand %p206, %p207
      %p209 = pneg %p208
      // Predicated region
      $region9: #{tpu_custom_call.1} parent=5 // pred_check
        _
      $region10: #{tpu_custom_call.1} parent=5 // pred_check_branch
        %211 = sbr.rel (%p208) target = $region12
      $region11: #{tpu_custom_call.1} parent=5 // pred_region
        %s212 = ssub.s32 %s24, 1
      $region12: #{tpu_custom_call.1} parent=5 // pred_fallthru
        _
      %p213 = scmp.lt.s32.totalorder %s24, 2
      // Predicated region
      $region13: #{tpu_custom_call.1} parent=5 // pred_check
        %p214 = pneg %p213
      $region14: #{tpu_custom_call.1} parent=5 // pred_check_branch
        %216 = sbr.rel (%p214) target = $region16
      $region15: #{tpu_custom_call.1} parent=5 // pred_region
        // Predicated region
        $region17: #{tpu_custom_call.1} parent=15 // pred_check
          %p217 = pneg %p58
        $region18: #{tpu_custom_call.1} parent=15 // pred_check_branch
          %219 = sbr.rel (%p217) target = $region20
        $region19: #{tpu_custom_call.1} parent=15 // pred_region
          %s220 = sand.u32 %s48, 1
          %s221 = scalar_lea.sflag [#allocation3], %s220
          %s222 = sand.u32 %s48, 1
          %s223 = smul.addr %s222, 16
          %s224 = scalar_lea.vmem [#allocation2], %s223
          %s226 = ssub.s32 256, 256
          %227 = vsyncadd %s221, %s226
          %s228 = smul.addr %s31, 4
          %s229 = sadd.s32 %s32, %s228
          %s230 = smul.addr %s229, 64
          %s231 = scalar_lea.hbm %s0, %s230
          %s232 = sshll.u32 %s224, 4
          %s233 = int_to_ptr.vmem [resolvable:$true] %s232
          %238 = dma.hbm_to_vmem [thread:$0]  %s231, 256, %s233, %s221, 64, 64, 4
        $region20: #{tpu_custom_call.1} parent=15 // pred_fallthru
          _
        // Predicated region
        $region21: #{tpu_custom_call.1} parent=15 // pred_check
          %p239 = pneg %p84
        $region22: #{tpu_custom_call.1} parent=15 // pred_check_branch
          %241 = sbr.rel (%p239) target = $region24
        $region23: #{tpu_custom_call.1} parent=15 // pred_region
          %s242 = sand.u32 %s24, 1
          %s243 = scalar_lea.sflag [#allocation6], %s242
          %s244 = sand.u32 %s74, 1
          %s245 = smul.addr %s244, 16
          %s246 = scalar_lea.vmem [#allocation5], %s245
          %s248 = ssub.s32 256, 256
          %249 = vsyncadd %s243, %s248
          %s250 = smul.addr %s31, 4
          %s251 = smul.addr %s250, 64
          %s252 = scalar_lea.hbm %s1, %s251
          %s253 = sshll.u32 %s246, 4
          %s254 = int_to_ptr.vmem [resolvable:$true] %s253
          %259 = dma.hbm_to_vmem [thread:$0]  %s252, 256, %s254, %s243, 64, 64, 4
        $region24: #{tpu_custom_call.1} parent=15 // pred_fallthru
          _
        // Predicated region
        $region25: #{tpu_custom_call.1} parent=15 // pred_check
          %p260 = pneg %p110
        $region26: #{tpu_custom_call.1} parent=15 // pred_check_branch
          %262 = sbr.rel (%p260) target = $region28
        $region27: #{tpu_custom_call.1} parent=15 // pred_region
          %s263 = sand.u32 %s24, 1
          %s264 = scalar_lea.sflag [#allocation6], %s263
          %s265 = sand.u32 %s100, 1
          %s266 = smul.addr %s265, 16
          %s267 = scalar_lea.vmem [#allocation7], %s266
          %s269 = ssub.s32 256, 256
          %270 = vsyncadd %s264, %s269
          %s271 = smul.addr %s31, 4
          %s272 = smul.addr %s271, 64
          %s273 = scalar_lea.hbm %s2, %s272
          %s274 = sshll.u32 %s267, 4
          %s275 = int_to_ptr.vmem [resolvable:$true] %s274
          %280 = dma.hbm_to_vmem [thread:$0]  %s273, 256, %s275, %s264, 64, 64, 4
        $region28: #{tpu_custom_call.1} parent=15 // pred_fallthru
          _
        // Predicated region
        $region29: #{tpu_custom_call.1} parent=15 // pred_check
          %p281 = pneg %p136
        $region30: #{tpu_custom_call.1} parent=15 // pred_check_branch
          %283 = sbr.rel (%p281) target = $region32
        $region31: #{tpu_custom_call.1} parent=15 // pred_region
          %p284 = scmp.lt.s32.totalorder %s31, 1
          %s285 = scalar_select %p284, %s31, 1
          %s286 = scalar_lea.vmem %s3, %s285
        $region32: #{tpu_custom_call.1} parent=15 // pred_fallthru
          _
      $region16: #{tpu_custom_call.1} parent=5 // pred_fallthru
        _
      %p287 = scmp.le.s32.totalorder 1, %s24
      %p288 = scmp.lt.s32.totalorder %s24, 3
      %p289 = pnand %p287, %p288
      %p290 = pneg %p289
      // Predicated region
      $region33: #{tpu_custom_call.1} parent=5 // pred_check
        _
      $region34: #{tpu_custom_call.1} parent=5 // pred_check_branch
        %292 = sbr.rel (%p289) target = $region36
      $region35: #{tpu_custom_call.1} parent=5 // pred_region
        %s293 = ssub.s32 %s24, 1
        %s294 = sand.u32 %s51, 1
        %s295 = scalar_lea.sflag [#allocation3], %s294
        %s296 = sand.u32 %s51, 1
        %s297 = smul.addr %s296, 16
        %s298 = scalar_lea.vmem [#allocation2], %s297
        // Predicated region
        $region37: #{tpu_custom_call.1} parent=35 // pred_check
          %p299 = pneg %p64
        $region38: #{tpu_custom_call.1} parent=35 // pred_check_branch
          %301 = sbr.rel (%p299) target = $region40
        $region39: #{tpu_custom_call.1} parent=35 // pred_region
          %302 = dma.done %s295, 256
        $region40: #{tpu_custom_call.1} parent=35 // pred_fallthru
          _
        %s303 = sand.u32 %s29, 1
        %s304 = scalar_lea.sflag [#allocation6], %s303
        %s305 = sand.u32 %s77, 1
        %s306 = smul.addr %s305, 16
        %s307 = scalar_lea.vmem [#allocation5], %s306
        // Predicated region
        $region41: #{tpu_custom_call.1} parent=35 // pred_check
          %p308 = pneg %p90
        $region42: #{tpu_custom_call.1} parent=35 // pred_check_branch
          %310 = sbr.rel (%p308) target = $region44
        $region43: #{tpu_custom_call.1} parent=35 // pred_region
          %311 = dma.done %s304, 256
        $region44: #{tpu_custom_call.1} parent=35 // pred_fallthru
          _
        %s312 = sand.u32 %s29, 1
        %s313 = scalar_lea.sflag [#allocation6], %s312
        %s314 = sand.u32 %s103, 1
        %s315 = smul.addr %s314, 16
        %s316 = scalar_lea.vmem [#allocation7], %s315
        // Predicated region
        $region45: #{tpu_custom_call.1} parent=35 // pred_check
          %p317 = pneg %p116
        $region46: #{tpu_custom_call.1} parent=35 // pred_check_branch
          %319 = sbr.rel (%p317) target = $region48
        $region47: #{tpu_custom_call.1} parent=35 // pred_region
          %320 = dma.done %s313, 256
        $region48: #{tpu_custom_call.1} parent=35 // pred_fallthru
          _
        %s321 = sand.u32 %s51, 1
        %s322 = scalar_lea.sflag [#allocation3], %s321
        %s323 = sand.u32 %s51, 1
        %s324 = smul.addr %s323, 16
        %s325 = scalar_lea.vmem [#allocation2], %s324
        %p326 = pneg %p64
        %p327 = pneg %p61
        %s328 = sand.u32 %s29, 1
        %s329 = scalar_lea.sflag [#allocation6], %s328
        %s330 = sand.u32 %s77, 1
        %s331 = smul.addr %s330, 16
        %s332 = scalar_lea.vmem [#allocation5], %s331
        %p333 = pneg %p90
        %p334 = pneg %p87
        %s335 = sand.u32 %s29, 1
        %s336 = scalar_lea.sflag [#allocation6], %s335
        %s337 = sand.u32 %s103, 1
        %s338 = smul.addr %s337, 16
        %s339 = scalar_lea.vmem [#allocation7], %s338
        %p340 = pneg %p116
        %p341 = pneg %p113
        %p342 = scmp.lt.s32.totalorder %s33, 1
        %s343 = scalar_select %p342, %s33, 1
        %s344 = scalar_lea.vmem %s3, %s343
        %p345 = pneg %p142
        %p346 = pneg %p139
        %p347 = pneg %p170
        %p348 = pneg %p167
        %s349 = sand.u32 %s157, 1
        %s350 = scalar_lea.sflag [#allocation4], %s349
        %s351 = sand.u32 %s157, 1
        %s352 = smul.addr %s351, 16
        %s353 = scalar_lea.vmem [#allocation8], %s352
        %p354 = pneg %p198
        %p355 = pneg %p195
        %s356 = sand.u32 %s185, 1
        %s357 = scalar_lea.sflag [#allocation10], %s356
        %s358 = sand.u32 %s185, 1
        %s359 = smul.addr %s358, 16
        %s360 = scalar_lea.vmem [#allocation9], %s359
        %p361 = scmp.lt.s32.totalorder %s33, 1
        %s362 = scalar_select %p361, %s33, 1
        %s363 = scalar_lea.vmem %s3, %s362
        %v365 = vld [vmem:[%s298] sm:$0xf]
        %v366 = vld [vmem:[%s298 + $0x4] sm:$0xf]
        %v367 = vld [vmem:[%s298 + $0x8] sm:$0xf]
        %v368 = vld [vmem:[%s298 + $0xc] sm:$0xf]
        %v369 = vld [vmem:[%s307] sm:$0xf]
        %v370 = vld [vmem:[%s307 + $0x4] sm:$0xf]
        %v371 = vld [vmem:[%s307 + $0x8] sm:$0xf]
        %v372 = vld [vmem:[%s307 + $0xc] sm:$0xf]
        %v373 = vld [vmem:[%s316] sm:$0xf]
        %v374 = vld [vmem:[%s316 + $0x4] sm:$0xf]
        %v375 = vld [vmem:[%s316 + $0x8] sm:$0xf]
        %v376 = vld [vmem:[%s316 + $0xc] sm:$0xf]
        %v377 = vld [vmem:[%s363] sm:$0x1]
        %vm378 = vcmask 261120
        %v380 = vsel %vm378, %v365, 0
        %v383 = vsel %vm378, %v369, 0
        %385 = vmatprep.subr.bf16.mxu0 0
        %386 = vmatpush1.bf16.xpose.msra.mxu0 %v383
        %387 = vmatprep.subr.bf16.mxu0 0
        %388 = vmatpush1.bf16.xpose.msra.mxu0 0
        %389 = vmatprep.subr.bf16.mxu0 0
        %390 = vmatpush1.bf16.xpose.msra.mxu0 0
        %391 = vmatprep.subr.bf16.mxu0 0
        %392 = vmatpush1.bf16.xpose.msra.mxu0 0
        %393 = vmatprep.subr.bf16.mxu0 0
        %394 = vmatpush1.bf16.xpose.msra.mxu0 0
        %395 = vmatprep.subr.bf16.mxu0 0
        %396 = vmatpush1.bf16.xpose.msra.mxu0 0
        %397 = vmatprep.subr.bf16.mxu0 0
        %398 = vmatpush1.bf16.xpose.msra.mxu0 0
        %399 = vmatprep.subr.bf16.mxu0 0
        %400 = vmatpush1.bf16.xpose.msra.mxu0 0
        %401 = vmatprep.subr.bf16.mxu0 0
        %402 = vmatpush1.bf16.xpose.msra.mxu0 0
        %403 = vmatprep.subr.bf16.mxu0 0
        %404 = vmatpush1.bf16.xpose.msra.mxu0 0
        %405 = vmatprep.subr.bf16.mxu0 0
        %406 = vmatpush1.bf16.xpose.msra.mxu0 0
        %407 = vmatprep.subr.bf16.mxu0 0
        %408 = vmatpush1.bf16.xpose.msra.mxu0 0
        %409 = vmatprep.subr.bf16.mxu0 0
        %410 = vmatpush1.bf16.xpose.msra.mxu0 0
        %411 = vmatprep.subr.bf16.mxu0 0
        %412 = vmatpush1.bf16.xpose.msra.mxu0 0
        %413 = vmatprep.subr.bf16.mxu0 0
        %414 = vmatpush1.bf16.xpose.msra.mxu0 0
        %415 = vmatprep.subr.bf16.mxu0 0
        %416 = vmatpush1.bf16.xpose.msra.mxu0 0
        %417 = vmatprep.mubr.bf16.mxu0 0
        %418 = vmatmul.mubr.bf16.gmra.mrb[0].mxu0 %v380
        %v419 = vpop.f32.mrb[0].mxu0
        %v420 = vadd.f32 0.0, %v419
        %v421 = vpop.f32.mrb[0].mxu0
        %v422 = vpop.f32.mrb[0].mxu0
        %v423 = vpop.f32.mrb[0].mxu0
        %424 = vdwg.mxu0
        %v426 = vsel %vm378, %v366, 0
        %v429 = vsel %vm378, %v370, 0
        %431 = vmatprep.subr.bf16.mxu0 0
        %432 = vmatpush1.bf16.xpose.msra.mxu0 %v429
        %433 = vmatprep.subr.bf16.mxu0 0
        %434 = vmatpush1.bf16.xpose.msra.mxu0 0
        %435 = vmatprep.subr.bf16.mxu0 0
        %436 = vmatpush1.bf16.xpose.msra.mxu0 0
        %437 = vmatprep.subr.bf16.mxu0 0
        %438 = vmatpush1.bf16.xpose.msra.mxu0 0
        %439 = vmatprep.subr.bf16.mxu0 0
        %440 = vmatpush1.bf16.xpose.msra.mxu0 0
        %441 = vmatprep.subr.bf16.mxu0 0
        %442 = vmatpush1.bf16.xpose.msra.mxu0 0
        %443 = vmatprep.subr.bf16.mxu0 0
        %444 = vmatpush1.bf16.xpose.msra.mxu0 0
        %445 = vmatprep.subr.bf16.mxu0 0
        %446 = vmatpush1.bf16.xpose.msra.mxu0 0
        %447 = vmatprep.subr.bf16.mxu0 0
        %448 = vmatpush1.bf16.xpose.msra.mxu0 0
        %449 = vmatprep.subr.bf16.mxu0 0
        %450 = vmatpush1.bf16.xpose.msra.mxu0 0
        %451 = vmatprep.subr.bf16.mxu0 0
        %452 = vmatpush1.bf16.xpose.msra.mxu0 0
        %453 = vmatprep.subr.bf16.mxu0 0
        %454 = vmatpush1.bf16.xpose.msra.mxu0 0
        %455 = vmatprep.subr.bf16.mxu0 0
        %456 = vmatpush1.bf16.xpose.msra.mxu0 0
        %457 = vmatprep.subr.bf16.mxu0 0
        %458 = vmatpush1.bf16.xpose.msra.mxu0 0
        %459 = vmatprep.subr.bf16.mxu0 0
        %460 = vmatpush1.bf16.xpose.msra.mxu0 0
        %461 = vmatprep.subr.bf16.mxu0 0
        %462 = vmatpush1.bf16.xpose.msra.mxu0 0
        %463 = vmatprep.mubr.bf16.mxu0 0
        %464 = vmatmul.mubr.bf16.gmra.mrb[0].mxu0 %v426
        %v465 = vpop.f32.mrb[0].mxu0
        %v466 = vadd.f32 0.0, %v465
        %v467 = vpop.f32.mrb[0].mxu0
        %v468 = vpop.f32.mrb[0].mxu0
        %v469 = vpop.f32.mrb[0].mxu0
        %470 = vdwg.mxu0
        %v472 = vsel %vm378, %v367, 0
        %v475 = vsel %vm378, %v371, 0
        %477 = vmatprep.subr.bf16.mxu0 0
        %478 = vmatpush1.bf16.xpose.msra.mxu0 %v475
        %479 = vmatprep.subr.bf16.mxu0 0
        %480 = vmatpush1.bf16.xpose.msra.mxu0 0
        %481 = vmatprep.subr.bf16.mxu0 0
        %482 = vmatpush1.bf16.xpose.msra.mxu0 0
        %483 = vmatprep.subr.bf16.mxu0 0
        %484 = vmatpush1.bf16.xpose.msra.mxu0 0
        %485 = vmatprep.subr.bf16.mxu0 0
        %486 = vmatpush1.bf16.xpose.msra.mxu0 0
        %487 = vmatprep.subr.bf16.mxu0 0
        %488 = vmatpush1.bf16.xpose.msra.mxu0 0
        %489 = vmatprep.subr.bf16.mxu0 0
        %490 = vmatpush1.bf16.xpose.msra.mxu0 0
        %491 = vmatprep.subr.bf16.mxu0 0
        %492 = vmatpush1.bf16.xpose.msra.mxu0 0
        %493 = vmatprep.subr.bf16.mxu0 0
        %494 = vmatpush1.bf16.xpose.msra.mxu0 0
        %495 = vmatprep.subr.bf16.mxu0 0
        %496 = vmatpush1.bf16.xpose.msra.mxu0 0
        %497 = vmatprep.subr.bf16.mxu0 0
        %498 = vmatpush1.bf16.xpose.msra.mxu0 0
        %499 = vmatprep.subr.bf16.mxu0 0
        %500 = vmatpush1.bf16.xpose.msra.mxu0 0
        %501 = vmatprep.subr.bf16.mxu0 0
        %502 = vmatpush1.bf16.xpose.msra.mxu0 0
        %503 = vmatprep.subr.bf16.mxu0 0
        %504 = vmatpush1.bf16.xpose.msra.mxu0 0
        %505 = vmatprep.subr.bf16.mxu0 0
        %506 = vmatpush1.bf16.xpose.msra.mxu0 0
        %507 = vmatprep.subr.bf16.mxu0 0
        %508 = vmatpush1.bf16.xpose.msra.mxu0 0
        %509 = vmatprep.mubr.bf16.mxu0 0
        %510 = vmatmul.mubr.bf16.gmra.mrb[0].mxu0 %v472
        %v511 = vpop.f32.mrb[0].mxu0
        %v512 = vadd.f32 0.0, %v511
        %v513 = vpop.f32.mrb[0].mxu0
        %v514 = vpop.f32.mrb[0].mxu0
        %v515 = vpop.f32.mrb[0].mxu0
        %516 = vdwg.mxu0
        %v518 = vsel %vm378, %v368, 0
        %v521 = vsel %vm378, %v372, 0
        %523 = vmatprep.subr.bf16.mxu0 0
        %524 = vmatpush1.bf16.xpose.msra.mxu0 %v521
        %525 = vmatprep.subr.bf16.mxu0 0
        %526 = vmatpush1.bf16.xpose.msra.mxu0 0
        %527 = vmatprep.subr.bf16.mxu0 0
        %528 = vmatpush1.bf16.xpose.msra.mxu0 0
        %529 = vmatprep.subr.bf16.mxu0 0
        %530 = vmatpush1.bf16.xpose.msra.mxu0 0
        %531 = vmatprep.subr.bf16.mxu0 0
        %532 = vmatpush1.bf16.xpose.msra.mxu0 0
        %533 = vmatprep.subr.bf16.mxu0 0
        %534 = vmatpush1.bf16.xpose.msra.mxu0 0
        %535 = vmatprep.subr.bf16.mxu0 0
        %536 = vmatpush1.bf16.xpose.msra.mxu0 0
        %537 = vmatprep.subr.bf16.mxu0 0
        %538 = vmatpush1.bf16.xpose.msra.mxu0 0
        %539 = vmatprep.subr.bf16.mxu0 0
        %540 = vmatpush1.bf16.xpose.msra.mxu0 0
        %541 = vmatprep.subr.bf16.mxu0 0
        %542 = vmatpush1.bf16.xpose.msra.mxu0 0
        %543 = vmatprep.subr.bf16.mxu0 0
        %544 = vmatpush1.bf16.xpose.msra.mxu0 0
        %545 = vmatprep.subr.bf16.mxu0 0
        %546 = vmatpush1.bf16.xpose.msra.mxu0 0
        %547 = vmatprep.subr.bf16.mxu0 0
        %548 = vmatpush1.bf16.xpose.msra.mxu0 0
        %549 = vmatprep.subr.bf16.mxu0 0
        %550 = vmatpush1.bf16.xpose.msra.mxu0 0
        %551 = vmatprep.subr.bf16.mxu0 0
        %552 = vmatpush1.bf16.xpose.msra.mxu0 0
        %553 = vmatprep.subr.bf16.mxu0 0
        %554 = vmatpush1.bf16.xpose.msra.mxu0 0
        %555 = vmatprep.mubr.bf16.mxu0 0
        %556 = vmatmul.mubr.bf16.gmra.mrb[0].mxu0 %v518
        %v557 = vpop.f32.mrb[0].mxu0
        %v558 = vadd.f32 0.0, %v557
        %v559 = vpop.f32.mrb[0].mxu0
        %v560 = vpop.f32.mrb[0].mxu0
        %v561 = vpop.f32.mrb[0].mxu0
        %562 = vdwg.mxu0
        %v563 = vmul.f32 %v420, 0.17677669
        %v564 = vmul.f32 %v466, 0.17677669
        %v565 = vmul.f32 %v512, 0.17677669
        %v566 = vmul.f32 %v558, 0.17677669
        %vm567 = vcmp.eq.s32.totalorder %v377, 0
        %v568 = vsel %vm567, 1, 0
        %v569 = vlaneseq
        %v570 = vshrl.u32 %v569, 7
        %v571 = vsub.s32 0, %v570
        %v572 = vrot.slane %v568, %v571
        %vm573 = vcmp.eq.s32.totalorder %v572, 1
        %v574 = vsel %vm573, -1e+09, %v563
        %v575 = vsel %vm573, -1e+09, %v564
        %v576 = vsel %vm573, -1e+09, %v565
        %v577 = vsel %vm573, -1e+09, %v566
        %vm578 = vcmask 64512
        %v579 = vsel %vm578, %v574, -inf
        %580 = vmax.xlane.f32.xlu0 %v579
        %v581 = vpop.xlane.xlu0 %580
        %v582 = vsel %vm578, %v575, -inf
        %583 = vmax.xlane.f32.xlu0 %v582
        %v584 = vpop.xlane.xlu0 %583
        %v585 = vsel %vm578, %v576, -inf
        %586 = vmax.xlane.f32.xlu0 %v585
        %v587 = vpop.xlane.xlu0 %586
        %v588 = vsel %vm578, %v577, -inf
        %589 = vmax.xlane.f32.xlu0 %v588
        %v590 = vpop.xlane.xlu0 %589
        %v591 = vsub.f32 %v574, %v581
        %v592 = vsub.f32 %v575, %v584
        %v593 = vsub.f32 %v576, %v587
        %v594 = vsub.f32 %v577, %v590
        %v595 = vmul.f32 %v591, 1.442695
        %v596 = vpow.pop %v595
        %v597 = vmul.f32 %v592, 1.442695
        %v598 = vpow.pop %v597
        %v599 = vmul.f32 %v593, 1.442695
        %v600 = vpow.pop %v599
        %v601 = vmul.f32 %v594, 1.442695
        %v602 = vpow.pop %v601
        %v603 = vsel %vm578, %v596, 0.0
        %604 = vadd.xlane.f32.xlu0 %v603
        %v605 = vpop.xlane.xlu0 %604
        %v606 = vsel %vm578, %v598, 0.0
        %607 = vadd.xlane.f32.xlu0 %v606
        %v608 = vpop.xlane.xlu0 %607
        %v609 = vsel %vm578, %v600, 0.0
        %610 = vadd.xlane.f32.xlu0 %v609
        %v611 = vpop.xlane.xlu0 %610
        %v612 = vsel %vm578, %v602, 0.0
        %613 = vadd.xlane.f32.xlu0 %v612
        %v614 = vpop.xlane.xlu0 %613
        %v615 = vrcp.pop %v605
        %v616 = vmul.f32 %v596, %v615
        %v617 = vrcp.pop %v608
        %v618 = vmul.f32 %v598, %v617
        %v619 = vrcp.pop %v611
        %v620 = vmul.f32 %v600, %v619
        %v621 = vrcp.pop %v614
        %v622 = vmul.f32 %v602, %v621
        %v623 = vpack.c.bf16 %v616, %v616
        %v624 = vpack.c.bf16 %v618, %v618
        %v625 = vpack.c.bf16 %v620, %v620
        %v626 = vpack.c.bf16 %v622, %v622
        %vm627 = vcmask 60416
        %628 = vst.msk [vmem:[%s360] sm:$0xf] %vm627, %v623
        %629 = vst.msk [vmem:[%s360 + $0x4] sm:$0xf] %vm627, %v624
        %630 = vst.msk [vmem:[%s360 + $0x8] sm:$0xf] %vm627, %v625
        %631 = vst.msk [vmem:[%s360 + $0xc] sm:$0xf] %vm627, %v626
        %v633 = vsel %vm578, %v623, 0
        %vm635 = vcmask 1043456
        %v637 = vsel %vm635, %v373, 0
        %639 = vmatprep.subr.bf16.mxu0 0
        %640 = vmatpush1.bf16.msra.mxu0 %v637
        %641 = vmatprep.subr.bf16.mxu0 0
        %642 = vmatpush1.bf16.msra.mxu0 0
        %643 = vmatprep.subr.bf16.mxu0 0
        %644 = vmatpush1.bf16.msra.mxu0 0
        %645 = vmatprep.subr.bf16.mxu0 0
        %646 = vmatpush1.bf16.msra.mxu0 0
        %647 = vmatprep.subr.bf16.mxu0 0
        %648 = vmatpush1.bf16.msra.mxu0 0
        %649 = vmatprep.subr.bf16.mxu0 0
        %650 = vmatpush1.bf16.msra.mxu0 0
        %651 = vmatprep.subr.bf16.mxu0 0
        %652 = vmatpush1.bf16.msra.mxu0 0
        %653 = vmatprep.subr.bf16.mxu0 0
        %654 = vmatpush1.bf16.msra.mxu0 0
        %655 = vmatprep.subr.bf16.mxu0 0
        %656 = vmatpush1.bf16.msra.mxu0 0
        %657 = vmatprep.subr.bf16.mxu0 0
        %658 = vmatpush1.bf16.msra.mxu0 0
        %659 = vmatprep.subr.bf16.mxu0 0
        %660 = vmatpush1.bf16.msra.mxu0 0
        %661 = vmatprep.subr.bf16.mxu0 0
        %662 = vmatpush1.bf16.msra.mxu0 0
        %663 = vmatprep.subr.bf16.mxu0 0
        %664 = vmatpush1.bf16.msra.mxu0 0
        %665 = vmatprep.subr.bf16.mxu0 0
        %666 = vmatpush1.bf16.msra.mxu0 0
        %667 = vmatprep.subr.bf16.mxu0 0
        %668 = vmatpush1.bf16.msra.mxu0 0
        %669 = vmatprep.subr.bf16.mxu0 0
        %670 = vmatpush1.bf16.msra.mxu0 0
        %671 = vmatprep.mubr.bf16.mxu0 0
        %672 = vmatmul.mubr.bf16.gmra.mrb[0].mxu0 %v633
        %v673 = vpop.f32.mrb[0].mxu0
        %v674 = vadd.f32 0.0, %v673
        %v675 = vpop.f32.mrb[0].mxu0
        %v676 = vpop.f32.mrb[0].mxu0
        %v677 = vpop.f32.mrb[0].mxu0
        %678 = vdwg.mxu0
        %v680 = vsel %vm578, %v624, 0
        %v683 = vsel %vm635, %v374, 0
        %685 = vmatprep.subr.bf16.mxu0 0
        %686 = vmatpush1.bf16.msra.mxu0 %v683
        %687 = vmatprep.subr.bf16.mxu0 0
        %688 = vmatpush1.bf16.msra.mxu0 0
        %689 = vmatprep.subr.bf16.mxu0 0
        %690 = vmatpush1.bf16.msra.mxu0 0
        %691 = vmatprep.subr.bf16.mxu0 0
        %692 = vmatpush1.bf16.msra.mxu0 0
        %693 = vmatprep.subr.bf16.mxu0 0
        %694 = vmatpush1.bf16.msra.mxu0 0
        %695 = vmatprep.subr.bf16.mxu0 0
        %696 = vmatpush1.bf16.msra.mxu0 0
        %697 = vmatprep.subr.bf16.mxu0 0
        %698 = vmatpush1.bf16.msra.mxu0 0
        %699 = vmatprep.subr.bf16.mxu0 0
        %700 = vmatpush1.bf16.msra.mxu0 0
        %701 = vmatprep.subr.bf16.mxu0 0
        %702 = vmatpush1.bf16.msra.mxu0 0
        %703 = vmatprep.subr.bf16.mxu0 0
        %704 = vmatpush1.bf16.msra.mxu0 0
        %705 = vmatprep.subr.bf16.mxu0 0
        %706 = vmatpush1.bf16.msra.mxu0 0
        %707 = vmatprep.subr.bf16.mxu0 0
        %708 = vmatpush1.bf16.msra.mxu0 0
        %709 = vmatprep.subr.bf16.mxu0 0
        %710 = vmatpush1.bf16.msra.mxu0 0
        %711 = vmatprep.subr.bf16.mxu0 0
        %712 = vmatpush1.bf16.msra.mxu0 0
        %713 = vmatprep.subr.bf16.mxu0 0
        %714 = vmatpush1.bf16.msra.mxu0 0
        %715 = vmatprep.subr.bf16.mxu0 0
        %716 = vmatpush1.bf16.msra.mxu0 0
        %717 = vmatprep.mubr.bf16.mxu0 0
        %718 = vmatmul.mubr.bf16.gmra.mrb[0].mxu0 %v680
        %v719 = vpop.f32.mrb[0].mxu0
        %v720 = vadd.f32 0.0, %v719
        %v721 = vpop.f32.mrb[0].mxu0
        %v722 = vpop.f32.mrb[0].mxu0
        %v723 = vpop.f32.mrb[0].mxu0
        %724 = vdwg.mxu0
        %v726 = vsel %vm578, %v625, 0
        %v729 = vsel %vm635, %v375, 0
        %731 = vmatprep.subr.bf16.mxu0 0
        %732 = vmatpush1.bf16.msra.mxu0 %v729
        %733 = vmatprep.subr.bf16.mxu0 0
        %734 = vmatpush1.bf16.msra.mxu0 0
        %735 = vmatprep.subr.bf16.mxu0 0
        %736 = vmatpush1.bf16.msra.mxu0 0
        %737 = vmatprep.subr.bf16.mxu0 0
        %738 = vmatpush1.bf16.msra.mxu0 0
        %739 = vmatprep.subr.bf16.mxu0 0
        %740 = vmatpush1.bf16.msra.mxu0 0
        %741 = vmatprep.subr.bf16.mxu0 0
        %742 = vmatpush1.bf16.msra.mxu0 0
        %743 = vmatprep.subr.bf16.mxu0 0
        %744 = vmatpush1.bf16.msra.mxu0 0
        %745 = vmatprep.subr.bf16.mxu0 0
        %746 = vmatpush1.bf16.msra.mxu0 0
        %747 = vmatprep.subr.bf16.mxu0 0
        %748 = vmatpush1.bf16.msra.mxu0 0
        %749 = vmatprep.subr.bf16.mxu0 0
        %750 = vmatpush1.bf16.msra.mxu0 0
        %751 = vmatprep.subr.bf16.mxu0 0
        %752 = vmatpush1.bf16.msra.mxu0 0
        %753 = vmatprep.subr.bf16.mxu0 0
        %754 = vmatpush1.bf16.msra.mxu0 0
        %755 = vmatprep.subr.bf16.mxu0 0
        %756 = vmatpush1.bf16.msra.mxu0 0
        %757 = vmatprep.subr.bf16.mxu0 0
        %758 = vmatpush1.bf16.msra.mxu0 0
        %759 = vmatprep.subr.bf16.mxu0 0
        %760 = vmatpush1.bf16.msra.mxu0 0
        %761 = vmatprep.subr.bf16.mxu0 0
        %762 = vmatpush1.bf16.msra.mxu0 0
        %763 = vmatprep.mubr.bf16.mxu0 0
        %764 = vmatmul.mubr.bf16.gmra.mrb[0].mxu0 %v726
        %v765 = vpop.f32.mrb[0].mxu0
        %v766 = vadd.f32 0.0, %v765
        %v767 = vpop.f32.mrb[0].mxu0
        %v768 = vpop.f32.mrb[0].mxu0
        %v769 = vpop.f32.mrb[0].mxu0
        %770 = vdwg.mxu0
        %v772 = vsel %vm578, %v626, 0
        %v775 = vsel %vm635, %v376, 0
        %777 = vmatprep.subr.bf16.mxu0 0
        %778 = vmatpush1.bf16.msra.mxu0 %v775
        %779 = vmatprep.subr.bf16.mxu0 0
        %780 = vmatpush1.bf16.msra.mxu0 0
        %781 = vmatprep.subr.bf16.mxu0 0
        %782 = vmatpush1.bf16.msra.mxu0 0
        %783 = vmatprep.subr.bf16.mxu0 0
        %784 = vmatpush1.bf16.msra.mxu0 0
        %785 = vmatprep.subr.bf16.mxu0 0
        %786 = vmatpush1.bf16.msra.mxu0 0
        %787 = vmatprep.subr.bf16.mxu0 0
        %788 = vmatpush1.bf16.msra.mxu0 0
        %789 = vmatprep.subr.bf16.mxu0 0
        %790 = vmatpush1.bf16.msra.mxu0 0
        %791 = vmatprep.subr.bf16.mxu0 0
        %792 = vmatpush1.bf16.msra.mxu0 0
        %793 = vmatprep.subr.bf16.mxu0 0
        %794 = vmatpush1.bf16.msra.mxu0 0
        %795 = vmatprep.subr.bf16.mxu0 0
        %796 = vmatpush1.bf16.msra.mxu0 0
        %797 = vmatprep.subr.bf16.mxu0 0
        %798 = vmatpush1.bf16.msra.mxu0 0
        %799 = vmatprep.subr.bf16.mxu0 0
        %800 = vmatpush1.bf16.msra.mxu0 0
        %801 = vmatprep.subr.bf16.mxu0 0
        %802 = vmatpush1.bf16.msra.mxu0 0
        %803 = vmatprep.subr.bf16.mxu0 0
        %804 = vmatpush1.bf16.msra.mxu0 0
        %805 = vmatprep.subr.bf16.mxu0 0
        %806 = vmatpush1.bf16.msra.mxu0 0
        %807 = vmatprep.subr.bf16.mxu0 0
        %808 = vmatpush1.bf16.msra.mxu0 0
        %809 = vmatprep.mubr.bf16.mxu0 0
        %810 = vmatmul.mubr.bf16.gmra.mrb[0].mxu0 %v772
        %v811 = vpop.f32.mrb[0].mxu0
        %v812 = vadd.f32 0.0, %v811
        %v813 = vpop.f32.mrb[0].mxu0
        %v814 = vpop.f32.mrb[0].mxu0
        %v815 = vpop.f32.mrb[0].mxu0
        %816 = vdwg.mxu0
        %v817 = vpack.c.bf16 %v674, %v674
        %v818 = vpack.c.bf16 %v720, %v720
        %v819 = vpack.c.bf16 %v766, %v766
        %v820 = vpack.c.bf16 %v812, %v812
        %vm821 = vcmask 257024
        %822 = vst.msk [vmem:[%s353] sm:$0xf] %vm821, %v817
        %823 = vst.msk [vmem:[%s353 + $0x4] sm:$0xf] %vm821, %v818
        %824 = vst.msk [vmem:[%s353 + $0x8] sm:$0xf] %vm821, %v819
        %825 = vst.msk [vmem:[%s353 + $0xc] sm:$0xf] %vm821, %v820
        %s826 = sand.u32 %s157, 1
        %s827 = scalar_lea.sflag [#allocation4], %s826
        %s828 = sand.u32 %s157, 1
        %s829 = smul.addr %s828, 16
        %s830 = scalar_lea.vmem [#allocation8], %s829
        %s831 = sand.u32 %s185, 1
        %s832 = scalar_lea.sflag [#allocation10], %s831
        %s833 = sand.u32 %s185, 1
        %s834 = smul.addr %s833, 16
        %s835 = scalar_lea.vmem [#allocation9], %s834
        // Predicated region
        $region49: #{tpu_custom_call.1} parent=35 // pred_check
          %p836 = pneg %p167
        $region50: #{tpu_custom_call.1} parent=35 // pred_check_branch
          %838 = sbr.rel (%p836) target = $region52
        $region51: #{tpu_custom_call.1} parent=35 // pred_region
          %s840 = ssub.s32 256, 256
          %841 = vsyncadd %s827, %s840
          %s842 = smul.addr %s33, 4
          %s843 = sadd.s32 %s34, %s842
          %s844 = smul.addr %s843, 64
          %s845 = scalar_lea.hbm %s4, %s844
          %s846 = sshll.u32 %s830, 4
          %s847 = int_to_ptr.vmem [resolvable:$true] %s846
          %852 = dma.vmem_to_hbm [thread:$0]  %s847, 256, %s845, %s827, 64, 64, 4
        $region52: #{tpu_custom_call.1} parent=35 // pred_fallthru
          _
        // Predicated region
        $region53: #{tpu_custom_call.1} parent=35 // pred_check
          %p853 = pneg %p195
        $region54: #{tpu_custom_call.1} parent=35 // pred_check_branch
          %855 = sbr.rel (%p853) target = $region56
        $region55: #{tpu_custom_call.1} parent=35 // pred_region
          %s857 = ssub.s32 256, 256
          %858 = vsyncadd %s832, %s857
          %s859 = smul.addr %s33, 4
          %s860 = sadd.s32 %s34, %s859
          %s861 = smul.addr %s860, 64
          %s862 = scalar_lea.hbm %s5, %s861
          %s863 = sshll.u32 %s835, 4
          %s864 = int_to_ptr.vmem [resolvable:$true] %s863
          %869 = dma.vmem_to_hbm [thread:$0]  %s864, 256, %s862, %s832, 64, 64, 4
        $region56: #{tpu_custom_call.1} parent=35 // pred_fallthru
          _
      $region36: #{tpu_custom_call.1} parent=5 // pred_fallthru
        _
      %p870 = scmp.le.s32.totalorder 2, %s24
      // Predicated region
      $region57: #{tpu_custom_call.1} parent=5 // pred_check
        %p871 = pneg %p870
      $region58: #{tpu_custom_call.1} parent=5 // pred_check_branch
        %873 = sbr.rel (%p871) target = $region60
      $region59: #{tpu_custom_call.1} parent=5 // pred_region
        %s874 = ssub.s32 %s24, 2
        // Predicated region
        $region61: #{tpu_custom_call.1} parent=59 // pred_check
          %p875 = pneg %p173
        $region62: #{tpu_custom_call.1} parent=59 // pred_check_branch
          %877 = sbr.rel (%p875) target = $region64
        $region63: #{tpu_custom_call.1} parent=59 // pred_region
          %s878 = sand.u32 %s158, 1
          %s879 = scalar_lea.sflag [#allocation4], %s878
          %s880 = sand.u32 %s158, 1
          %s881 = smul.addr %s880, 16
          %s882 = scalar_lea.vmem [#allocation8], %s881
          %883 = dma.done %s879, 256
        $region64: #{tpu_custom_call.1} parent=59 // pred_fallthru
          _
        // Predicated region
        $region65: #{tpu_custom_call.1} parent=59 // pred_check
          %p884 = pneg %p201
        $region66: #{tpu_custom_call.1} parent=59 // pred_check_branch
          %886 = sbr.rel (%p884) target = $region68
        $region67: #{tpu_custom_call.1} parent=59 // pred_region
          %s887 = sand.u32 %s186, 1
          %s888 = scalar_lea.sflag [#allocation10], %s887
          %s889 = sand.u32 %s186, 1
          %s890 = smul.addr %s889, 16
          %s891 = scalar_lea.vmem [#allocation9], %s890
          %892 = dma.done %s888, 256
        $region68: #{tpu_custom_call.1} parent=59 // pred_fallthru
          _
      $region60: #{tpu_custom_call.1} parent=5 // pred_fallthru
        _
    $region6: #{tpu_custom_call.1} parent=1 // loop_footer
      %s28 = sadd.s32 1, %s24
    $region7: #{tpu_custom_call.1} parent=1 // loop_footer_branch
      %23 = sbr.rel target = $region3
    $region8: #{tpu_custom_call.1} parent=1 // loop_exit
      _
    %893 = vsyncpa [#allocation3], 1
    %s894 = scalar_lea.sflag [#allocation3], 1
    %895 = vsyncpa %s894, 1
    %896 = vsyncpa [#allocation6], 1
    %s897 = scalar_lea.sflag [#allocation6], 1
    %898 = vsyncpa %s897, 1
    %899 = vsyncpa [#allocation4], 1
    %s900 = scalar_lea.sflag [#allocation4], 1
    %901 = vsyncpa %s900, 1
    %902 = vsyncpa [#allocation10], 1
    %s903 = scalar_lea.sflag [#allocation10], 1
    %904 = vsyncpa %s903, 1

</llo_original>
